<compile_context>
chip_gen: v7x
topology: tpu7x:2x2x1
jax: 0.10.0
libtpu: 0.0.40
codegen_flags: <defaults>
</compile_context>

<pallas_src>
import jax
import jax.numpy as jnp
from jax.experimental import pallas as pl
from jax.experimental.pallas import tpu as pltpu


def sigma_loss_kernel(x_ref, t_ref, sum_ref, cnt_ref):
    """One (ny, tile_n) lane-dense chunk of the masked gauss loss.

    x_ref   : (2, ny, tile_n)  VMEM  (x[0] = p, x[1] = s)
    t_ref   : (ny, tile_n)     VMEM  target (NaN = missing / padding)
    sum_ref : (1, ny, 1)       resident output block: per-channel loss sum
    cnt_ref : (1, ny, 1)       resident output block: per-channel valid count
    """
    i = pl.program_id(1)

    @pl.when(i == 0)
    def _init():
        sum_ref[...] = jnp.zeros_like(sum_ref)
        cnt_ref[...] = jnp.zeros_like(cnt_ref)

    p = x_ref[0].astype(jnp.float32)   # (ny, tile_n)
    s = x_ref[1].astype(jnp.float32)   # (ny, tile_n)
    t = t_ref[...].astype(jnp.float32)

    mask = t == t                                  # finite (non-NaN) targets
    diff = jnp.where(mask, p - t, 0.0)
    # gauss prior: loss = exp(-s) * (p - t)^2 / 2 + s / 2   (masked)
    loss = jnp.where(mask, jnp.exp(-s) * (diff * diff) * 0.5 + s * 0.5, 0.0)

    sum_ref[...] += jnp.sum(loss, axis=1, keepdims=True)[None]
    cnt_ref[...] += jnp.sum(mask.astype(jnp.float32), axis=1, keepdims=True)[None]


def sigma_loss(output, target, *, tile_n=8192, num_splits=2):
    """Pallas implementation of SigmaLoss(prior='gauss').forward(output, target).

    output: (T, B, 2*ny)  (even channels = p, odd channels = log-variance s)
    target: (T, B, ny)    (NaN marks missing observations)
    """
    T, B, ny2 = output.shape
    ny = target.shape[-1]
    assert ny2 == 2 * ny
    N = T * B

    # Single re-layout pass: (T,B,2ny) -> (N,ny,2) [free reshape] -> (2,ny,N).
    x = jnp.transpose(output.reshape(N, ny, 2), (2, 1, 0))    # (2, ny, N)
    t = jnp.transpose(target.reshape(N, ny), (1, 0))          # (ny, N)

    # Lane-dense tile: multiple of 128, clamped so tiny problems use one tile.
    tile_n = max(128, min(int(tile_n), pl.cdiv(N, num_splits * 128) * 128))
    n_per_split = pl.cdiv(N, num_splits * tile_n) * tile_n
    n_pad = num_splits * n_per_split
    pad = n_pad - N
    if pad:
        x = jnp.pad(x, ((0, 0), (0, 0), (0, pad)))                        # zeros
        t = jnp.pad(t, ((0, 0), (0, pad)), constant_values=jnp.nan)       # masked
    tiles_per_split = n_per_split // tile_n

    sums, cnts = pl.pallas_call(
        sigma_loss_kernel,
        out_shape=(
            jax.ShapeDtypeStruct((num_splits, ny, 1), jnp.float32),
            jax.ShapeDtypeStruct((num_splits, ny, 1), jnp.float32),
        ),
        grid_spec=pltpu.PrefetchScalarGridSpec(
            num_scalar_prefetch=0,
            grid=(num_splits, tiles_per_split),
            in_specs=[
                pl.BlockSpec((2, ny, tile_n),
                             lambda c, i: (0, 0, c * tiles_per_split + i)),
                pl.BlockSpec((ny, tile_n),
                             lambda c, i: (0, c * tiles_per_split + i)),
            ],
            out_specs=[
                pl.BlockSpec((1, ny, 1), lambda c, i: (c, 0, 0)),
                pl.BlockSpec((1, ny, 1), lambda c, i: (c, 0, 0)),
            ],
        ),
        compiler_params=pltpu.CompilerParams(
            dimension_semantics=("parallel", "arbitrary"),
        ),
    )(x, t)

    # Final combine in plain JAX: lossMean = sum_k mean_over_valid(loss_k).
    # Note: counts accumulate in f32 (exact up to ~2^24 valid samples/channel).
    total_sum = jnp.sum(sums[:, :, 0], axis=0)   # (ny,)
    total_cnt = jnp.sum(cnts[:, :, 0], axis=0)   # (ny,)
    return jnp.sum(total_sum / total_cnt)


def sigma_loss_ref(output, target):
    """Pure-JAX reference mirroring the PyTorch loop (prior='gauss')."""
    ny = target.shape[-1]
    loss_mean = jnp.float32(0.0)
    for k in range(ny):
        p0 = output[:, :, 2 * k].astype(jnp.float32)
        s0 = output[:, :, 2 * k + 1].astype(jnp.float32)
        t0 = target[:, :, k].astype(jnp.float32)
        mask = t0 == t0
        diff = jnp.where(mask, p0 - jnp.where(mask, t0, 0.0), 0.0)
        loss = jnp.exp(-s0) * (diff ** 2) / 2.0 + s0 / 2.0
        loss = jnp.where(mask, loss, 0.0)
        loss_mean = loss_mean + jnp.sum(loss) / jnp.sum(mask.astype(jnp.float32))
    return loss_mean


if __name__ == "__main__":
    key = jax.random.PRNGKey(0)

    # Test 1: small canonical shape, with NaNs in the target.
    T, B, ny = 8, 2, 2
    k1, k2, key = jax.random.split(key, 3)
    output = jax.random.normal(k1, (T, B, 2 * ny), dtype=jnp.float32)
    target = jax.random.normal(k2, (T, B, ny), dtype=jnp.float32)
    target = target.at[0, 0, 0].set(jnp.nan)
    target = target.at[3, 1, 1].set(jnp.nan)
    target = target.at[5, 0, 1].set(jnp.nan)

    got = jax.block_until_ready(sigma_loss(output, target))
    want = jax.block_until_ready(sigma_loss_ref(output, target))
    assert jnp.allclose(got, want, rtol=1e-5, atol=1e-5), (got, want)

    # Test 2: ragged N (exercises padding + multi-split accumulation).
    T2, B2, ny2 = 37, 11, 3
    k3, k4, key = jax.random.split(key, 3)
    output2 = jax.random.normal(k3, (T2, B2, 2 * ny2), dtype=jnp.float32)
    target2 = jax.random.normal(k4, (T2, B2, ny2), dtype=jnp.float32)
    nan_mask = jax.random.bernoulli(key, 0.1, target2.shape)
    target2 = jnp.where(nan_mask, jnp.nan, target2)

    got2 = jax.block_until_ready(sigma_loss(output2, target2))
    want2 = jax.block_until_ready(sigma_loss_ref(output2, target2))
    assert jnp.allclose(got2, want2, rtol=1e-5, atol=1e-5), (got2, want2)

    print("KERNEL_OK")
</pallas_src>

<mosaic_0001>
module attributes {stable_mosaic.version = 11 : i64} {
  func.func @sigma_loss_kernel(%arg0: i32, %arg1: i32, %arg2: memref<2x2x128xf32, #tpu.memory_space<vmem>>, %arg3: memref<2x128xf32, #tpu.memory_space<vmem>>, %arg4: memref<1x2x1xf32, #tpu.memory_space<vmem>>, %arg5: memref<1x2x1xf32, #tpu.memory_space<vmem>>) attributes {dimension_semantics = [#tpu.dimension_semantics<parallel>, #tpu.dimension_semantics<arbitrary>], iteration_bounds = array<i64: 2, 1>, scalar_prefetch = 0 : i64, scratch_operands = 0 : i64, tpu.core_type = #tpu.core_type<tc>, window_params = [{transform_indices = @transform_0, window_bounds = array<i64: 2, 2, 128>}, {transform_indices = @transform_1, window_bounds = array<i64: 2, 128>}, {transform_indices = @transform_2, window_bounds = array<i64: 1, 2, 1>}, {transform_indices = @transform_3, window_bounds = array<i64: 1, 2, 1>}]} {
    %c0_i32 = arith.constant 0 : i32
    %0 = arith.cmpi eq, %arg1, %c0_i32 : i32
    %1 = arith.extui %0 : i1 to i32
    %c0_i32_0 = arith.constant 0 : i32
    %2 = arith.cmpi ne, %1, %c0_i32_0 : i32
    scf.if %2 {
      %cst_25 = arith.constant 0.000000e+00 : f32
      %38 = vector.broadcast %cst_25 : f32 to vector<1x2x1xf32>
      %c0_26 = arith.constant 0 : index
      %c0_27 = arith.constant 0 : index
      %c0_28 = arith.constant 0 : index
      %39 = vector.load %arg4[%c0_26, %c0_27, %c0_28] : memref<1x2x1xf32, #tpu.memory_space<vmem>>, vector<1x2x1xf32>
      tpu.vector_store %arg4[%c0_26, %c0_27, %c0_28], %38 {strides = array<i32>} : memref<1x2x1xf32, #tpu.memory_space<vmem>>, vector<1x2x1xf32>,
      %cst_29 = arith.constant 0.000000e+00 : f32
      %40 = vector.broadcast %cst_29 : f32 to vector<1x2x1xf32>
      %c0_30 = arith.constant 0 : index
      %c0_31 = arith.constant 0 : index
      %c0_32 = arith.constant 0 : index
      %41 = vector.load %arg5[%c0_30, %c0_31, %c0_32] : memref<1x2x1xf32, #tpu.memory_space<vmem>>, vector<1x2x1xf32>
      tpu.vector_store %arg5[%c0_30, %c0_31, %c0_32], %40 {strides = array<i32>} : memref<1x2x1xf32, #tpu.memory_space<vmem>>, vector<1x2x1xf32>,
    } else {
    }
    %c0 = arith.constant 0 : index
    %c0_1 = arith.constant 0 : index
    %c0_2 = arith.constant 0 : index
    %3 = vector.load %arg2[%c0, %c0_1, %c0_2] : memref<2x2x128xf32, #tpu.memory_space<vmem>>, vector<1x2x128xf32>
    %4 = vector.shape_cast %3 : vector<1x2x128xf32> to vector<2x128xf32>
    %c1 = arith.constant 1 : index
    %c0_3 = arith.constant 0 : index
    %c0_4 = arith.constant 0 : index
    %5 = vector.load %arg2[%c1, %c0_3, %c0_4] : memref<2x2x128xf32, #tpu.memory_space<vmem>>, vector<1x2x128xf32>
    %6 = vector.shape_cast %5 : vector<1x2x128xf32> to vector<2x128xf32>
    %c0_5 = arith.constant 0 : index
    %c0_6 = arith.constant 0 : index
    %7 = vector.load %arg3[%c0_5, %c0_6] : memref<2x128xf32, #tpu.memory_space<vmem>>, vector<2x128xf32>
    %8 = arith.cmpf oeq, %7, %7 : vector<2x128xf32>
    %9 = arith.subf %4, %7 : vector<2x128xf32>
    %cst = arith.constant 0.000000e+00 : f32
    %10 = vector.broadcast %cst : f32 to vector<2x128xf32>
    %11 = arith.select %8, %9, %10 : vector<2x128xi1>, vector<2x128xf32>
    %cst_7 = arith.constant 0.000000e+00 : f32
    %12 = vector.broadcast %cst_7 : f32 to vector<2x128xf32>
    %13 = arith.subf %12, %6 : vector<2x128xf32>
    %14 = math.exp %13 : vector<2x128xf32>
    %15 = arith.mulf %11, %11 : vector<2x128xf32>
    %16 = arith.mulf %14, %15 : vector<2x128xf32>
    %cst_8 = arith.constant 5.000000e-01 : f32
    %17 = vector.broadcast %cst_8 : f32 to vector<2x128xf32>
    %18 = arith.mulf %16, %17 : vector<2x128xf32>
    %cst_9 = arith.constant 5.000000e-01 : f32
    %19 = vector.broadcast %cst_9 : f32 to vector<2x128xf32>
    %20 = arith.mulf %6, %19 : vector<2x128xf32>
    %21 = arith.addf %18, %20 : vector<2x128xf32>
    %cst_10 = arith.constant 0.000000e+00 : f32
    %22 = vector.broadcast %cst_10 : f32 to vector<2x128xf32>
    %23 = arith.select %8, %21, %22 : vector<2x128xi1>, vector<2x128xf32>
    %c0_11 = arith.constant 0 : index
    %c0_12 = arith.constant 0 : index
    %c0_13 = arith.constant 0 : index
    %24 = vector.load %arg4[%c0_11, %c0_12, %c0_13] : memref<1x2x1xf32, #tpu.memory_space<vmem>>, vector<1x2x1xf32>
    %cst_14 = arith.constant dense<0.000000e+00> : vector<2xf32>
    %25 = vector.multi_reduction <add>, %23, %cst_14 [1] : vector<2x128xf32> to vector<2xf32>
    %26 = vector.shape_cast %25 : vector<2xf32> to vector<2x1xf32>
    %27 = vector.shape_cast %26 : vector<2x1xf32> to vector<1x2x1xf32>
    %28 = arith.addf %24, %27 : vector<1x2x1xf32>
    %c0_15 = arith.constant 0 : index
    %c0_16 = arith.constant 0 : index
    %c0_17 = arith.constant 0 : index
    %29 = vector.load %arg4[%c0_15, %c0_16, %c0_17] : memref<1x2x1xf32, #tpu.memory_space<vmem>>, vector<1x2x1xf32>
    tpu.vector_store %arg4[%c0_15, %c0_16, %c0_17], %28 {strides = array<i32>} : memref<1x2x1xf32, #tpu.memory_space<vmem>>, vector<1x2x1xf32>,
    %c0_18 = arith.constant 0 : index
    %c0_19 = arith.constant 0 : index
    %c0_20 = arith.constant 0 : index
    %30 = vector.load %arg5[%c0_18, %c0_19, %c0_20] : memref<1x2x1xf32, #tpu.memory_space<vmem>>, vector<1x2x1xf32>
    %31 = arith.extui %8 : vector<2x128xi1> to vector<2x128xi32>
    %32 = arith.sitofp %31 : vector<2x128xi32> to vector<2x128xf32>
    %cst_21 = arith.constant dense<0.000000e+00> : vector<2xf32>
    %33 = vector.multi_reduction <add>, %32, %cst_21 [1] : vector<2x128xf32> to vector<2xf32>
    %34 = vector.shape_cast %33 : vector<2xf32> to vector<2x1xf32>
    %35 = vector.shape_cast %34 : vector<2x1xf32> to vector<1x2x1xf32>
    %36 = arith.addf %30, %35 : vector<1x2x1xf32>
    %c0_22 = arith.constant 0 : index
    %c0_23 = arith.constant 0 : index
    %c0_24 = arith.constant 0 : index
    %37 = vector.load %arg5[%c0_22, %c0_23, %c0_24] : memref<1x2x1xf32, #tpu.memory_space<vmem>>, vector<1x2x1xf32>
    tpu.vector_store %arg5[%c0_22, %c0_23, %c0_24], %36 {strides = array<i32>} : memref<1x2x1xf32, #tpu.memory_space<vmem>>, vector<1x2x1xf32>,
    return
  }
  func.func @transform_0(%arg0: i32, %arg1: i32) -> (i32, i32, i32) {
    %c1_i32 = arith.constant 1 : i32
    %0 = arith.muli %arg0, %c1_i32 : i32
    %1 = arith.addi %0, %arg1 : i32
    %c0_i32 = arith.constant 0 : i32
    %c0_i32_0 = arith.constant 0 : i32
    %c0_i32_1 = arith.constant 0 : i32
    return %c0_i32, %c0_i32_0, %1 : i32, i32, i32
  }
  func.func @transform_1(%arg0: i32, %arg1: i32) -> (i32, i32) {
    %c1_i32 = arith.constant 1 : i32
    %0 = arith.muli %arg0, %c1_i32 : i32
    %1 = arith.addi %0, %arg1 : i32
    %c0_i32 = arith.constant 0 : i32
    %c0_i32_0 = arith.constant 0 : i32
    return %c0_i32, %1 : i32, i32
  }
  func.func @transform_2(%arg0: i32, %arg1: i32) -> (i32, i32, i32) {
    %c0_i32 = arith.constant 0 : i32
    %c0_i32_0 = arith.constant 0 : i32
    %c0_i32_1 = arith.constant 0 : i32
    return %arg0, %c0_i32, %c0_i32_0 : i32, i32, i32
  }
  func.func @transform_3(%arg0: i32, %arg1: i32) -> (i32, i32, i32) {
    %c0_i32 = arith.constant 0 : i32
    %c0_i32_0 = arith.constant 0 : i32
    %c0_i32_1 = arith.constant 0 : i32
    return %arg0, %c0_i32, %c0_i32_0 : i32, i32, i32
  }
}

</mosaic_0001>

<llo_original>
// kernel: tpu_custom_call.1
$region0: #{tpu_custom_call.1}
  #allocation0 [shape = 'u32[]', space=smem, size = 0x4, offset = 0x4, fixed_abs, tag = 'smem constant byte address 0x4 - core index']
  #allocation1 [shape = 'u32[144,128]{1,0:T(1,128)}', space=vmem, size = 0x12000, scoped, tag = 'internal scratch']
  %s0 = inlined_call_operand.hbm [shape: f32[2,2,256], index: 0, kind: input, shape index: {}]
  %s1 = inlined_call_operand.hbm [shape: f32[2,256], index: 1, kind: input, shape index: {}]
  %s2 = inlined_call_operand.vmem [shape: f32[2,2,1], index: 2, kind: output, shape index: {0}]
  %s3 = inlined_call_operand.vmem [shape: f32[2,2,1], index: 3, kind: output, shape index: {1}]
  %4 = xla_tuple %s2, %s3
  %s5 = sld [smem:[#allocation0]]
  $region61: #{tpu_custom_call.1} parent=0
    _
  %s7 = ssub.s32 1, %s5
  %s8 = scalar_select 0, %s7, %s5
  $region1: #{tpu_custom_call.1} parent=0
    #allocation2 [shape = 'u8[4096]{0}', space=vmem, size = 0x1000, scoped, tag = 'input window, operand 0']
    #allocation3 [shape = 's32[2]{0}', space=sflag, size = 0x8, scoped, tag = 'scoped memory for tpu_custom_call.1']
    #allocation4 [shape = 'u8[2048]{0}', space=vmem, size = 0x800, scoped, tag = 'input window, operand 1']
    #allocation5 [shape = 's32[2]{0}', space=sflag, size = 0x8, scoped, tag = 'scoped memory for tpu_custom_call.1']
    %9 = vsyncpa [#allocation3], 0
    %s10 = scalar_lea.sflag [#allocation3], 1
    %11 = vsyncpa %s10, 0
    %12 = vsyncpa [#allocation5], 0
    %s13 = scalar_lea.sflag [#allocation5], 1
    %14 = vsyncpa %s13, 0
    loop: start=0, step=1, limit=4
    $region2: #{tpu_custom_call.1} parent=1 // loop_pre_header
      _
    $region3: #{tpu_custom_call.1} parent=1 // loop_header
      %s16 = sphi 0, %s20
      %p17 = scmp.ge.s32.totalorder %s16, 4
      %s23 = sphi 0, %s35
      %s24 = sphi 0, %s31
      %s25 = sphi 0, %s23
      %s26 = sphi 0, %s24
      %s27 = sphi 0, %s25
      %s28 = sphi 0, %s26
      %s40 = sphi 0, %s42
      %s43 = sphi 0, %s40
      %s44 = sphi 0, %s43
      %s60 = sphi 0, %s44
      %s68 = sphi 0, %s70
      %s71 = sphi 0, %s68
      %s72 = sphi 0, %s71
      %s88 = sphi 0, %s72
      %s94 = sphi 0, %s96
      %s97 = sphi 0, %s94
      %s98 = sphi 0, %s97
      %s114 = sphi 0, %s98
      %s120 = sphi 0, %s122
      %s123 = sphi 0, %s120
      %s124 = sphi 0, %s123
      %s140 = sphi 0, %s124
    $region4: #{tpu_custom_call.1} parent=1 // loop_header_branch
      %19 = sbr.rel (%p17) target = $region8
    $region5: #{tpu_custom_call.1} parent=1 // loop_body
      %s21 = ssub.s32 %s16, 1
      %s22 = ssub.s32 %s16, 2
      %s29 = sadd.s32 1, %s24
      %p30 = scmp.ge.s32.totalorder %s29, 1
      %s31 = scalar_select %p30, 0, %s29
      %s32 = sadd.s32 1, %s23
      %s33 = scalar_select %p30, %s32, %s23
      %p34 = scmp.ge.s32.totalorder %s33, 2
      %s35 = scalar_select %p34, 0, %s33
      %s36 = sadd.s32 %s23, %s24
      %s37 = sadd.s32 %s35, %s31
      %s38 = ssub.s32 %s36, %s37
      %p39 = scmp.eq.s32.totalorder %s38, 0
      %s41 = sadd.s32 %s40, 1
      %s42 = scalar_select %p39, %s40, %s41
      %p45 = pneg %p39
      %p46 = scmp.eq.s32.totalorder %s16, 1
      %p47 = por %p45, %p46
      %p48 = scmp.ne.s32.totalorder %s40, %s43
      %p49 = scmp.eq.s32.totalorder %s16, 0
      %p50 = por %p48, %p49
      %p51 = scmp.ne.s32.totalorder %s40, %s43
      %p52 = scmp.eq.s32.totalorder %s21, 1
      %p53 = por %p51, %p52
      %p54 = scmp.ne.s32.totalorder %s43, %s44
      %p55 = scmp.eq.s32.totalorder %s21, 0
      %p56 = por %p54, %p55
      %p57 = scmp.ne.s32.totalorder %s43, %s44
      %p58 = scmp.eq.s32.totalorder %s22, 1
      %p59 = por %p57, %p58
      %p61 = scmp.ne.s32.totalorder %s44, %s60
      %p62 = scmp.eq.s32.totalorder %s22, 0
      %p63 = por %p61, %p62
      %s64 = sadd.s32 %s23, %s24
      %s65 = sadd.s32 %s35, %s31
      %s66 = ssub.s32 %s64, %s65
      %p67 = scmp.eq.s32.totalorder %s66, 0
      %s69 = sadd.s32 %s68, 1
      %s70 = scalar_select %p67, %s68, %s69
      %p73 = pneg %p67
      %p74 = scmp.eq.s32.totalorder %s16, 1
      %p75 = por %p73, %p74
      %p76 = scmp.ne.s32.totalorder %s68, %s71
      %p77 = scmp.eq.s32.totalorder %s16, 0
      %p78 = por %p76, %p77
      %p79 = scmp.ne.s32.totalorder %s68, %s71
      %p80 = scmp.eq.s32.totalorder %s21, 1
      %p81 = por %p79, %p80
      %p82 = scmp.ne.s32.totalorder %s71, %s72
      %p83 = scmp.eq.s32.totalorder %s21, 0
      %p84 = por %p82, %p83
      %p85 = scmp.ne.s32.totalorder %s71, %s72
      %p86 = scmp.eq.s32.totalorder %s22, 1
      %p87 = por %p85, %p86
      %p89 = scmp.ne.s32.totalorder %s72, %s88
      %p90 = scmp.eq.s32.totalorder %s22, 0
      %p91 = por %p89, %p90
      %s92 = ssub.s32 %s23, %s35
      %p93 = scmp.eq.s32.totalorder %s92, 0
      %s95 = sadd.s32 %s94, 1
      %s96 = scalar_select %p93, %s94, %s95
      %p99 = pneg %p93
      %p100 = scmp.eq.s32.totalorder %s16, 1
      %p101 = por %p99, %p100
      %p102 = scmp.ne.s32.totalorder %s94, %s97
      %p103 = scmp.eq.s32.totalorder %s16, 0
      %p104 = por %p102, %p103
      %p105 = scmp.ne.s32.totalorder %s94, %s97
      %p106 = scmp.eq.s32.totalorder %s21, 1
      %p107 = por %p105, %p106
      %p108 = scmp.ne.s32.totalorder %s97, %s98
      %p109 = scmp.eq.s32.totalorder %s21, 0
      %p110 = por %p108, %p109
      %p111 = scmp.ne.s32.totalorder %s97, %s98
      %p112 = scmp.eq.s32.totalorder %s22, 1
      %p113 = por %p111, %p112
      %p115 = scmp.ne.s32.totalorder %s98, %s114
      %p116 = scmp.eq.s32.totalorder %s22, 0
      %p117 = por %p115, %p116
      %s118 = ssub.s32 %s23, %s35
      %p119 = scmp.eq.s32.totalorder %s118, 0
      %s121 = sadd.s32 %s120, 1
      %s122 = scalar_select %p119, %s120, %s121
      %p125 = pneg %p119
      %p126 = scmp.eq.s32.totalorder %s16, 1
      %p127 = por %p125, %p126
      %p128 = scmp.ne.s32.totalorder %s120, %s123
      %p129 = scmp.eq.s32.totalorder %s16, 0
      %p130 = por %p128, %p129
      %p131 = scmp.ne.s32.totalorder %s120, %s123
      %p132 = scmp.eq.s32.totalorder %s21, 1
      %p133 = por %p131, %p132
      %p134 = scmp.ne.s32.totalorder %s123, %s124
      %p135 = scmp.eq.s32.totalorder %s21, 0
      %p136 = por %p134, %p135
      %p137 = scmp.ne.s32.totalorder %s123, %s124
      %p138 = scmp.eq.s32.totalorder %s22, 1
      %p139 = por %p137, %p138
      %p141 = scmp.ne.s32.totalorder %s124, %s140
      %p142 = scmp.eq.s32.totalorder %s22, 0
      %p143 = por %p141, %p142
      %p144 = scmp.le.s32.totalorder 1, %s16
      %p145 = scmp.lt.s32.totalorder %s16, 3
      %p146 = pnand %p144, %p145
      %p147 = pneg %p146
      // Predicated region
      $region9: #{tpu_custom_call.1} parent=5 // pred_check
        _
      $region10: #{tpu_custom_call.1} parent=5 // pred_check_branch
        %149 = sbr.rel (%p146) target = $region12
      $region11: #{tpu_custom_call.1} parent=5 // pred_region
        %s150 = ssub.s32 %s16, 1
      $region12: #{tpu_custom_call.1} parent=5 // pred_fallthru
        _
      %p151 = scmp.lt.s32.totalorder %s16, 2
      // Predicated region
      $region13: #{tpu_custom_call.1} parent=5 // pred_check
        %p152 = pneg %p151
      $region14: #{tpu_custom_call.1} parent=5 // pred_check_branch
        %154 = sbr.rel (%p152) target = $region16
      $region15: #{tpu_custom_call.1} parent=5 // pred_region
        // Predicated region
        $region17: #{tpu_custom_call.1} parent=15 // pred_check
          %p155 = pneg %p50
        $region18: #{tpu_custom_call.1} parent=15 // pred_check_branch
          %157 = sbr.rel (%p155) target = $region20
        $region19: #{tpu_custom_call.1} parent=15 // pred_region
          %s158 = sand.u32 %s40, 1
          %s159 = scalar_lea.sflag [#allocation3], %s158
          %s160 = sand.u32 %s40, 1
          %s161 = smul.addr %s160, 4
          %s162 = scalar_lea.vmem [#allocation2], %s161
          %s163 = sadd.s32 %s23, %s24
          %s165 = ssub.s32 64, 64
          %166 = vsyncadd %s159, %s165
          %s167 = smul.addr %s163, 32
          %s168 = scalar_lea.hbm %s0, %s167
          %s169 = sshll.u32 %s162, 4
          %s170 = int_to_ptr.vmem [resolvable:$true] %s169
          %175 = dma.hbm_to_vmem [thread:$0]  %s168, 64, %s170, %s159, 64, 32, 2
        $region20: #{tpu_custom_call.1} parent=15 // pred_fallthru
          _
        // Predicated region
        $region21: #{tpu_custom_call.1} parent=15 // pred_check
          %p176 = pneg %p78
        $region22: #{tpu_custom_call.1} parent=15 // pred_check_branch
          %178 = sbr.rel (%p176) target = $region24
        $region23: #{tpu_custom_call.1} parent=15 // pred_region
          %s179 = sand.u32 %s68, 1
          %s180 = scalar_lea.sflag [#allocation5], %s179
          %s181 = sand.u32 %s68, 1
          %s182 = smul.addr %s181, 2
          %s183 = scalar_lea.vmem [#allocation4], %s182
          %s184 = sadd.s32 %s23, %s24
          %s186 = ssub.s32 32, 32
          %187 = vsyncadd %s180, %s186
          %s188 = smul.addr %s184, 32
          %s189 = scalar_lea.hbm %s1, %s188
          %s191 = sshll.u32 %s183, 4
          %s192 = int_to_ptr.vmem [resolvable:$true] %s191
          %194 = dma.hbm_to_vmem [thread:$0]  %s189, 32, %s192, %s180
        $region24: #{tpu_custom_call.1} parent=15 // pred_fallthru
          _
      $region16: #{tpu_custom_call.1} parent=5 // pred_fallthru
        _
      %p195 = scmp.le.s32.totalorder 1, %s16
      %p196 = scmp.lt.s32.totalorder %s16, 3
      %p197 = pnand %p195, %p196
      %p198 = pneg %p197
      // Predicated region
      $region25: #{tpu_custom_call.1} parent=5 // pred_check
        _
      $region26: #{tpu_custom_call.1} parent=5 // pred_check_branch
        %200 = sbr.rel (%p197) target = $region28
      $region27: #{tpu_custom_call.1} parent=5 // pred_region
        %s201 = ssub.s32 %s16, 1
        %s202 = sand.u32 %s43, 1
        %s203 = scalar_lea.sflag [#allocation3], %s202
        %s204 = sand.u32 %s43, 1
        %s205 = smul.addr %s204, 4
        %s206 = scalar_lea.vmem [#allocation2], %s205
        // Predicated region
        $region29: #{tpu_custom_call.1} parent=27 // pred_check
          %p207 = pneg %p56
        $region30: #{tpu_custom_call.1} parent=27 // pred_check_branch
          %209 = sbr.rel (%p207) target = $region32
        $region31: #{tpu_custom_call.1} parent=27 // pred_region
          %210 = dma.done %s203, 64
        $region32: #{tpu_custom_call.1} parent=27 // pred_fallthru
          _
        %s211 = sand.u32 %s71, 1
        %s212 = scalar_lea.sflag [#allocation5], %s211
        %s213 = sand.u32 %s71, 1
        %s214 = smul.addr %s213, 2
        %s215 = scalar_lea.vmem [#allocation4], %s214
        // Predicated region
        $region33: #{tpu_custom_call.1} parent=27 // pred_check
          %p216 = pneg %p84
        $region34: #{tpu_custom_call.1} parent=27 // pred_check_branch
          %218 = sbr.rel (%p216) target = $region36
        $region35: #{tpu_custom_call.1} parent=27 // pred_region
          %219 = dma.done %s212, 32
        $region36: #{tpu_custom_call.1} parent=27 // pred_fallthru
          _
        %s220 = sand.u32 %s43, 1
        %s221 = scalar_lea.sflag [#allocation3], %s220
        %s222 = sand.u32 %s43, 1
        %s223 = smul.addr %s222, 4
        %s224 = scalar_lea.vmem [#allocation2], %s223
        %p225 = pneg %p56
        %p226 = pneg %p53
        %s227 = sand.u32 %s71, 1
        %s228 = scalar_lea.sflag [#allocation5], %s227
        %s229 = sand.u32 %s71, 1
        %s230 = smul.addr %s229, 2
        %s231 = scalar_lea.vmem [#allocation4], %s230
        %p232 = pneg %p84
        %p233 = pneg %p81
        %p234 = pneg %p110
        %p235 = pneg %p107
        %p236 = scmp.lt.s32.totalorder %s25, 1
        %s237 = scalar_select %p236, %s25, 1
        %s238 = smul.addr %s237, 2
        %s239 = scalar_lea.vmem %s2, %s238
        %p240 = pneg %p136
        %p241 = pneg %p133
        %p242 = scmp.lt.s32.totalorder %s25, 1
        %s243 = scalar_select %p242, %s25, 1
        %s244 = smul.addr %s243, 2
        %s245 = scalar_lea.vmem %s3, %s244
        %s246 = sadd.s32 %s25, %s26
        %s247 = sadd.s32 %s25, %s26
        %p248 = scmp.lt.s32.totalorder %s25, 1
        %s249 = scalar_select %p248, %s25, 1
        %s250 = smul.addr %s249, 2
        %s251 = scalar_lea.vmem %s2, %s250
        %p252 = scmp.lt.s32.totalorder %s25, 1
        %s253 = scalar_select %p252, %s25, 1
        %s254 = smul.addr %s253, 2
        %s255 = scalar_lea.vmem %s3, %s254
        %p256 = scmp.eq.s32.totalorder %s26, 0
        // Predicated region
        $region37: #{tpu_custom_call.1} parent=27 // pred_check
          %p257 = pneg %p256
        $region38: #{tpu_custom_call.1} parent=27 // pred_check_branch
          %259 = sbr.rel (%p257) target = $region40
        $region39: #{tpu_custom_call.1} parent=27 // pred_region
          %vm260 = vcmask 1024
          %261 = vst.msk [vmem:[%s251] sm:$0x3] %vm260, 0.0
          %262 = vst.msk [vmem:[%s255] sm:$0x3] %vm260, 0.0
        $region40: #{tpu_custom_call.1} parent=27 // pred_fallthru
          _
        %v263 = vld [vmem:[%s206] sm:$0x3]
        %s264 = scalar_lea.vmem %s206, 2 [#allocation2]
        %v265 = vld [vmem:[%s264] sm:$0x3]
        %v266 = vld [vmem:[%s215] sm:$0x3]
        %vm267 = vcmp.eq.f32.partialorder %v266, %v266
        %v268 = vsub.f32 %v263, %v266
        %v269 = vsel %vm267, %v268, 0.0
        %v270 = vsub.f32 0.0, %v265
        %v271 = vmul.f32 %v270, 1.442695
        %v272 = vpow.pop %v271
        %v273 = vmul.f32 %v269, %v269
        %v274 = vmul.f32 %v272, %v273
        %v275 = vmul.f32 %v274, 0.5
        %v276 = vmul.f32 %v265, 0.5
        %v277 = vadd.f32 %v275, %v276
        %v278 = vsel %vm267, %v277, 0.0
        %v279 = vld [vmem:[%s251] sm:$0x3]
        %vm280 = vcmask 1041408
        %v281 = vsel %vm280, %v278, 0.0
        %282 = vadd.xlane.f32.xlu0 %v281
        %v283 = vpop.xlane.xlu0 %282
        %v284 = vadd.f32 %v279, %v283
        %vm285 = vcmask 1024
        %286 = vst.msk [vmem:[%s251] sm:$0x3] %vm285, %v284
        %v287 = vld [vmem:[%s255] sm:$0x3]
        %v288 = vsel %vm267, 1, 0
        %v289 = vcvt.s32.f32 %v288
        %v290 = vsel %vm280, %v289, 0.0
        %291 = vadd.xlane.f32.xlu0 %v290
        %v292 = vpop.xlane.xlu0 %291
        %v293 = vadd.f32 %v287, %v292
        %294 = vst.msk [vmem:[%s255] sm:$0x3] %vm285, %v293
        %p295 = scmp.lt.s32.totalorder %s25, 1
        %s296 = scalar_select %p295, %s25, 1
        %s297 = smul.addr %s296, 2
        %s298 = scalar_lea.vmem %s2, %s297
        %p299 = scmp.lt.s32.totalorder %s25, 1
        %s300 = scalar_select %p299, %s25, 1
        %s301 = smul.addr %s300, 2
        %s302 = scalar_lea.vmem %s3, %s301
        // Predicated region
        $region41: #{tpu_custom_call.1} parent=27 // pred_check
          %p303 = pneg %p107
        $region42: #{tpu_custom_call.1} parent=27 // pred_check_branch
          %305 = sbr.rel (%p303) target = $region44
        $region43: #{tpu_custom_call.1} parent=27 // pred_region
          _
        $region44: #{tpu_custom_call.1} parent=27 // pred_fallthru
          _
        // Predicated region
        $region45: #{tpu_custom_call.1} parent=27 // pred_check
          %p306 = pneg %p133
        $region46: #{tpu_custom_call.1} parent=27 // pred_check_branch
          %308 = sbr.rel (%p306) target = $region48
        $region47: #{tpu_custom_call.1} parent=27 // pred_region
          _
        $region48: #{tpu_custom_call.1} parent=27 // pred_fallthru
          _
      $region28: #{tpu_custom_call.1} parent=5 // pred_fallthru
        _
      %p309 = scmp.le.s32.totalorder 2, %s16
      // Predicated region
      $region49: #{tpu_custom_call.1} parent=5 // pred_check
        %p310 = pneg %p309
      $region50: #{tpu_custom_call.1} parent=5 // pred_check_branch
        %312 = sbr.rel (%p310) target = $region52
      $region51: #{tpu_custom_call.1} parent=5 // pred_region
        %s313 = ssub.s32 %s16, 2
        // Predicated region
        $region53: #{tpu_custom_call.1} parent=51 // pred_check
          %p314 = pneg %p113
        $region54: #{tpu_custom_call.1} parent=51 // pred_check_branch
          %316 = sbr.rel (%p314) target = $region56
        $region55: #{tpu_custom_call.1} parent=51 // pred_region
          %p317 = scmp.lt.s32.totalorder %s27, 1
          %s318 = scalar_select %p317, %s27, 1
          %s319 = smul.addr %s318, 2
          %s320 = scalar_lea.vmem %s2, %s319
        $region56: #{tpu_custom_call.1} parent=51 // pred_fallthru
          _
        // Predicated region
        $region57: #{tpu_custom_call.1} parent=51 // pred_check
          %p321 = pneg %p139
        $region58: #{tpu_custom_call.1} parent=51 // pred_check_branch
          %323 = sbr.rel (%p321) target = $region60
        $region59: #{tpu_custom_call.1} parent=51 // pred_region
          %p324 = scmp.lt.s32.totalorder %s27, 1
          %s325 = scalar_select %p324, %s27, 1
          %s326 = smul.addr %s325, 2
          %s327 = scalar_lea.vmem %s3, %s326
        $region60: #{tpu_custom_call.1} parent=51 // pred_fallthru
          _
      $region52: #{tpu_custom_call.1} parent=5 // pred_fallthru
        _
    $region6: #{tpu_custom_call.1} parent=1 // loop_footer
      %s20 = sadd.s32 1, %s16
    $region7: #{tpu_custom_call.1} parent=1 // loop_footer_branch
      %15 = sbr.rel target = $region3
    $region8: #{tpu_custom_call.1} parent=1 // loop_exit
      _
    %328 = vsyncpa [#allocation3], 1
    %s329 = scalar_lea.sflag [#allocation3], 1
    %330 = vsyncpa %s329, 1
    %331 = vsyncpa [#allocation5], 1
    %s332 = scalar_lea.sflag [#allocation5], 1
    %333 = vsyncpa %s332, 1

</llo_original>
